<compile_context>
chip_gen: v5e
topology: v5e:2x2
jax: 0.10.0
libtpu: 0.0.40
codegen_flags: <defaults>
</compile_context>

<pallas_src>
import jax
import jax.numpy as jnp
from jax.experimental import pallas as pl
from jax.experimental.pallas import tpu as pltpu


# ----------------------------------------------------------------------------- #
# Pallas kernel
# ----------------------------------------------------------------------------- #
def _rel_pos_emb_kernel(q_ref, e_ref, m_ref, t_ref, o_ref):
    # q_ref: (R, 2D)   pair-packed queries (two slices side by side in lanes)
    # e_ref: (2D, 2C)  block-diag gathered relative embeddings, C = h*h + w*w
    # m_ref: (R, 2C)   0/1 query-row mask (f32, exact)
    # t_ref: (2C, 2J)  block-diag 0/1 key-grid expansion (also sums h + w terms)
    # o_ref: (R, 2J)   pair-packed logits, lane-dense when h*w >= 64
    z = jnp.dot(q_ref[...], e_ref[...], preferred_element_type=jnp.float32)
    zm = (z * m_ref[...]).astype(t_ref.dtype)
    o_ref[...] = jnp.dot(zm, t_ref[...],
                         preferred_element_type=jnp.float32).astype(o_ref.dtype)


# ----------------------------------------------------------------------------- #
# Wrapper
# ----------------------------------------------------------------------------- #
def rel_pos_emb(q, rel_height, rel_width, fmap_size, mxu_dtype=None):
    """q: (B, NH, h*w, D); rel_height: (2h-1, D); rel_width: (2w-1, D).

    Returns logits (B, NH, h*w, h*w) == RelPosEmb(fmap_size, D).forward(q).
    mxu_dtype: optional dtype (e.g. jnp.bfloat16) for the MXU operands; the
    accumulation stays f32. Default: q.dtype.
    """
    B, NH, n_q, D = q.shape
    h, w = fmap_size
    assert n_q == h * w
    assert rel_height.shape == (2 * h - 1, D)
    assert rel_width.shape == (2 * w - 1, D)
    n_k = h * w
    out_dtype = q.dtype
    cdt = jnp.dtype(mxu_dtype) if mxu_dtype is not None else jnp.dtype(q.dtype)

    ch, cw = h * h, w * w
    C = ch + cw
    f32 = jnp.float32

    # ---- grid-invariant constants (tiny; built once by XLA in the wrapper) ---
    # E1[d, qx*h + kx]       = rel_height[(h-1) + kx - qx, d]
    # E1[d, h*h + qy*w + ky] = rel_width [(w-1) + ky - qy, d]
    idx_h = (h - 1) + jnp.arange(h)[None, :] - jnp.arange(h)[:, None]      # (qx, kx)
    idx_w = (w - 1) + jnp.arange(w)[None, :] - jnp.arange(w)[:, None]      # (qy, ky)
    eh = jnp.transpose(rel_height.astype(f32)[idx_h], (2, 0, 1)).reshape(D, ch)
    ew = jnp.transpose(rel_width.astype(f32)[idx_w], (2, 0, 1)).reshape(D, cw)
    e1 = jnp.concatenate([eh, ew], axis=1)                                 # (D, C)

    ii = jnp.arange(n_q)
    c_h = jnp.arange(ch)
    c_w = jnp.arange(cw)
    # M1[i, qx*h+kx] = [qx == i//w];  M1[i, h*h + qy*w+ky] = [qy == i%w]
    m1 = jnp.concatenate(
        [(c_h[None, :] // h) == (ii // w)[:, None],
         (c_w[None, :] // w) == (ii % w)[:, None]], axis=1).astype(f32)    # (I, C)

    jj = jnp.arange(n_k)
    # T1[qx*h+kx, j] = [kx == j//w];  T1[h*h + qy*w+ky, j] = [ky == j%w]
    t1 = jnp.concatenate(
        [(c_h[:, None] % h) == (jj // w)[None, :],
         (c_w[:, None] % w) == (jj % w)[None, :]], axis=0).astype(f32)     # (C, J)

    def blockdiag(a):
        z = jnp.zeros_like(a)
        return jnp.concatenate([jnp.concatenate([a, z], axis=1),
                                jnp.concatenate([z, a], axis=1)], axis=0)

    e2 = blockdiag(e1).astype(cdt)                                         # (2D, 2C)
    t2 = blockdiag(t1).astype(cdt)                                         # (2C, 2J)

    # ---- pack two (batch, head) slices per output row group (lane packing) ---
    BH = B * NH
    q3 = q.reshape(BH, n_q, D).astype(cdt)
    BH_pad = BH + (BH % 2)
    if BH_pad != BH:                       # pad to an even number of slices
        q3 = jnp.concatenate(
            [q3, jnp.zeros((BH_pad - BH, n_q, D), q3.dtype)], axis=0)
    n_pairs = BH_pad // 2
    # qp[p*I + i, t*D + d] = q[slice 2p+t, i, d]
    qp = (q3.reshape(n_pairs, 2, n_q, D)
            .transpose(0, 2, 1, 3)
            .reshape(n_pairs * n_q, 2 * D))

    # Two "parallel" grid steps (both TensorCores on v7x; pure pipelining on
    # v5e/v6e); fall back to a single full-array step when the row blocking
    # would violate the (8, 128) sublane rule.
    if n_pairs % 2 == 0 and ((n_pairs // 2) * n_q) % 8 == 0:
        n_steps = 2
    else:
        n_steps = 1
    gp = n_pairs // n_steps
    rows_blk = gp * n_q

    m2 = jnp.tile(m1, (gp, 2))                                             # (rows_blk, 2C)

    # ---- VMEM budget: raise the scoped limit only if actually needed ---------
    itemsize = jnp.dtype(cdt).itemsize
    const_bytes = (e2.size + t2.size) * itemsize + m2.size * 4
    blk_bytes = (rows_blk * 2 * D * itemsize
                 + rows_blk * 2 * n_k * jnp.dtype(out_dtype).itemsize)
    approx_vmem = 2 * (const_bytes + blk_bytes)        # double-buffered estimate
    cp = dict(dimension_semantics=("parallel",))
    if approx_vmem > 24 * 1024 * 1024:
        # lift v5e/v6e scoped defaults (16/32 MiB), stay under v7x's 64 MiB VMEM
        cp["vmem_limit_bytes"] = int(min(2 * approx_vmem, 48 * 1024 * 1024))

    out_p = pl.pallas_call(
        _rel_pos_emb_kernel,
        out_shape=jax.ShapeDtypeStruct((n_pairs * n_q, 2 * n_k), out_dtype),
        grid=(n_steps,),
        in_specs=[
            pl.BlockSpec((rows_blk, 2 * D), lambda s: (s, 0)),
            pl.BlockSpec((2 * D, 2 * C), lambda s: (0, 0)),
            pl.BlockSpec((rows_blk, 2 * C), lambda s: (0, 0)),
            pl.BlockSpec((2 * C, 2 * n_k), lambda s: (0, 0)),
        ],
        out_specs=pl.BlockSpec((rows_blk, 2 * n_k), lambda s: (s, 0)),
        compiler_params=pltpu.CompilerParams(**cp),
    )(qp, e2, m2, t2)

    # unpack the lane-packed pairs: out_p[p*I + i, v*J + j] = logits[2p+v, i, j]
    out = (out_p.reshape(n_pairs, n_q, 2, n_k)
                .transpose(0, 2, 1, 3)
                .reshape(BH_pad, n_q, n_k)[:BH]
                .reshape(B, NH, n_q, n_k))
    return out


# ----------------------------------------------------------------------------- #
# Pure-JAX reference: literal port of the PyTorch module
# ----------------------------------------------------------------------------- #
def _rel_to_abs(x):
    b, hh, l, _ = x.shape
    x = jnp.concatenate([x, jnp.zeros((b, hh, l, 1), x.dtype)], axis=3)
    flat_x = x.reshape(b, hh, l * 2 * l)
    flat_x = jnp.concatenate([flat_x, jnp.zeros((b, hh, l - 1), x.dtype)], axis=2)
    final_x = flat_x.reshape(b, hh, l + 1, 2 * l - 1)
    return final_x[:, :, :l, l - 1:]


def _relative_logits_1d(q, rel_k):
    b, heads, hh, ww, _ = q.shape
    logits = jnp.einsum('bhxyd,rd->bhxyr', q, rel_k,
                        precision=jax.lax.Precision.HIGHEST)
    logits = logits.reshape(b, heads * hh, ww, 2 * ww - 1)
    logits = _rel_to_abs(logits)
    logits = logits.reshape(b, heads, hh, ww, ww)
    logits = jnp.broadcast_to(logits[:, :, :, None, :, :],
                              (b, heads, hh, hh, ww, ww))
    return logits


def rel_pos_emb_reference(q, rel_height, rel_width, fmap_size):
    h, w = fmap_size
    B, NH, I, D = q.shape
    q5 = q.reshape(B, NH, h, w, D)
    logits_w = _relative_logits_1d(q5, rel_width)                 # b n x i y j
    logits_w = logits_w.transpose(0, 1, 2, 4, 3, 5).reshape(B, NH, h * w, h * w)
    q5t = q5.transpose(0, 1, 3, 2, 4)                             # b n y x d
    logits_h = _relative_logits_1d(q5t, rel_height)               # b n x i y j
    logits_h = logits_h.transpose(0, 1, 4, 2, 5, 3).reshape(B, NH, h * w, h * w)
    return logits_w + logits_h


if __name__ == "__main__":
    # Small, module-consistent shapes: fmap_size = 8 -> I = J = 64, dim_head = 32.
    B, NH = 2, 4
    fmap_size = (8, 8)
    h, w = fmap_size
    D = 32
    n_q = h * w

    key = jax.random.PRNGKey(0)
    k_q, k_h, k_w = jax.random.split(key, 3)
    scale = D ** (-0.5)

    # Snap test data onto the bf16 grid so every MXU product is exact and the
    # check below can be tight (1e-4), independent of how the f32 matmul is
    # split into bf16 passes on the MXU.
    def snap(x):
        return x.astype(jnp.bfloat16).astype(jnp.float32)

    q = snap(jax.random.normal(k_q, (B, NH, n_q, D), dtype=jnp.float32))
    rel_height = snap(jax.random.normal(k_h, (2 * h - 1, D), dtype=jnp.float32) * scale)
    rel_width = snap(jax.random.normal(k_w, (2 * w - 1, D), dtype=jnp.float32) * scale)

    fn = jax.jit(rel_pos_emb, static_argnums=(3,))
    out = jax.block_until_ready(fn(q, rel_height, rel_width, fmap_size))

    ref = rel_pos_emb_reference(q, rel_height, rel_width, fmap_size)
    assert out.shape == (B, NH, n_q, n_q)
    max_err = float(jnp.max(jnp.abs(out - ref)))
    assert jnp.allclose(out, ref, atol=1e-4, rtol=1e-4), f"max abs err {max_err}"
    print("KERNEL_OK")
</pallas_src>

<mosaic_0001>
module attributes {stable_mosaic.version = 11 : i64} {
  func.func @_rel_pos_emb_kernel(%arg0: i32, %arg1: memref<128x64xf32, #tpu.memory_space<vmem>>, %arg2: memref<64x256xf32, #tpu.memory_space<vmem>>, %arg3: memref<128x256xf32, #tpu.memory_space<vmem>>, %arg4: memref<256x128xf32, #tpu.memory_space<vmem>>, %arg5: memref<128x128xf32, #tpu.memory_space<vmem>>) attributes {dimension_semantics = [#tpu.dimension_semantics<parallel>], iteration_bounds = array<i64: 2>, scalar_prefetch = 0 : i64, scratch_operands = 0 : i64, tpu.core_type = #tpu.core_type<tc>, window_params = [{transform_indices = @transform_0, window_bounds = array<i64: 128, 64>}, {pipeline_mode = #tpu.pipeline_mode<synchronous>, transform_indices = @transform_1, window_bounds = array<i64: 64, 256>}, {pipeline_mode = #tpu.pipeline_mode<synchronous>, transform_indices = @transform_2, window_bounds = array<i64: 128, 256>}, {pipeline_mode = #tpu.pipeline_mode<synchronous>, transform_indices = @transform_3, window_bounds = array<i64: 256, 128>}, {transform_indices = @transform_4, window_bounds = array<i64: 128, 128>}]} {
    %c0 = arith.constant 0 : index
    %c0_0 = arith.constant 0 : index
    %0 = vector.load %arg1[%c0, %c0_0] : memref<128x64xf32, #tpu.memory_space<vmem>>, vector<128x64xf32>
    %c0_1 = arith.constant 0 : index
    %c0_2 = arith.constant 0 : index
    %1 = vector.load %arg2[%c0_1, %c0_2] : memref<64x256xf32, #tpu.memory_space<vmem>>, vector<64x256xf32>
    %cst = arith.constant dense<0.000000e+00> : vector<128x256xf32>
    %2 = tpu.matmul %0, %1, %cst {dimension_numbers = #tpu.dot_dimension_numbers<[1], [0], [0], [1], [0, 0, 1, 1], [], []>} : vector<128x64xf32>, vector<64x256xf32>, vector<128x256xf32> -> vector<128x256xf32>
    %c0_3 = arith.constant 0 : index
    %c0_4 = arith.constant 0 : index
    %3 = vector.load %arg3[%c0_3, %c0_4] : memref<128x256xf32, #tpu.memory_space<vmem>>, vector<128x256xf32>
    %4 = arith.mulf %2, %3 : vector<128x256xf32>
    %c0_5 = arith.constant 0 : index
    %c0_6 = arith.constant 0 : index
    %5 = vector.load %arg4[%c0_5, %c0_6] : memref<256x128xf32, #tpu.memory_space<vmem>>, vector<256x128xf32>
    %cst_7 = arith.constant dense<0.000000e+00> : vector<128x128xf32>
    %6 = tpu.matmul %4, %5, %cst_7 {dimension_numbers = #tpu.dot_dimension_numbers<[1], [0], [0], [1], [0, 0, 1, 1], [], []>} : vector<128x256xf32>, vector<256x128xf32>, vector<128x128xf32> -> vector<128x128xf32>
    %c0_8 = arith.constant 0 : index
    %c0_9 = arith.constant 0 : index
    %7 = vector.load %arg5[%c0_8, %c0_9] : memref<128x128xf32, #tpu.memory_space<vmem>>, vector<128x128xf32>
    tpu.vector_store %arg5[%c0_8, %c0_9], %6 {strides = array<i32>} : memref<128x128xf32, #tpu.memory_space<vmem>>, vector<128x128xf32>,
    return
  }
  func.func @transform_0(%arg0: i32) -> (i32, i32) {
    %c0_i32 = arith.constant 0 : i32
    %c0_i32_0 = arith.constant 0 : i32
    return %arg0, %c0_i32 : i32, i32
  }
  func.func @transform_1(%arg0: i32) -> (i32, i32) {
    %c0_i32 = arith.constant 0 : i32
    %c0_i32_0 = arith.constant 0 : i32
    %c0_i32_1 = arith.constant 0 : i32
    return %c0_i32, %c0_i32_0 : i32, i32
  }
  func.func @transform_2(%arg0: i32) -> (i32, i32) {
    %c0_i32 = arith.constant 0 : i32
    %c0_i32_0 = arith.constant 0 : i32
    %c0_i32_1 = arith.constant 0 : i32
    return %c0_i32, %c0_i32_0 : i32, i32
  }
  func.func @transform_3(%arg0: i32) -> (i32, i32) {
    %c0_i32 = arith.constant 0 : i32
    %c0_i32_0 = arith.constant 0 : i32
    %c0_i32_1 = arith.constant 0 : i32
    return %c0_i32, %c0_i32_0 : i32, i32
  }
  func.func @transform_4(%arg0: i32) -> (i32, i32) {
    %c0_i32 = arith.constant 0 : i32
    %c0_i32_0 = arith.constant 0 : i32
    return %arg0, %c0_i32 : i32, i32
  }
}

</mosaic_0001>

<llo_original>
// kernel: tile.8
$region0: #{tile.8}
  #allocation0 [shape = 's32[1]{0}', space=sflag, size = 0x4, scoped, tag = 'scoped memory for tile.8']
  %s0 = inlined_call_operand.vmem [shape: f32[64,128], index: 0, kind: input, shape index: {}]
  %s1 = inlined_call_operand.vmem [shape: f32[2,64,2,128], index: 1, kind: output, shape index: {}]
  // Predicated region
  $region2: #{tile.8} parent=0 // pred_check
    _
  $region3: #{tile.8} parent=0 // pred_check_branch
    %3 = sbr.rel (0) target = $region5
  $region4: #{tile.8} parent=0 // pred_region
    _
  $region5: #{tile.8} parent=0 // pred_fallthru
    _
  %v4 = vld [vmem:[%s0] ss:$0 sm:$0xff]
  %5 = vst [vmem:[%s1] sm:$0x3] %v4
  %s6 = scalar_lea.vmem %s1, 128
  %7 = vst [vmem:[%s6] sm:$0x3] %v4
  %s8 = scalar_lea.vmem %s0, 1
  %v9 = vld [vmem:[%s8] ss:$0 sm:$0xff]
  %s10 = scalar_lea.vmem %s1, 2
  %11 = vst [vmem:[%s10] sm:$0x3] %v9
  %s12 = scalar_lea.vmem %s1, 130
  %13 = vst [vmem:[%s12] sm:$0x3] %v9
  %s14 = scalar_lea.vmem %s0, 2
  %v15 = vld [vmem:[%s14] ss:$0 sm:$0xff]
  %s16 = scalar_lea.vmem %s1, 4
  %17 = vst [vmem:[%s16] sm:$0x3] %v15
  %s18 = scalar_lea.vmem %s1, 132
  %19 = vst [vmem:[%s18] sm:$0x3] %v15
  %s20 = scalar_lea.vmem %s0, 3
  %v21 = vld [vmem:[%s20] ss:$0 sm:$0xff]
  %s22 = scalar_lea.vmem %s1, 6
  %23 = vst [vmem:[%s22] sm:$0x3] %v21
  %s24 = scalar_lea.vmem %s1, 134
  %25 = vst [vmem:[%s24] sm:$0x3] %v21
  %s26 = scalar_lea.vmem %s0, 4
  %v27 = vld [vmem:[%s26] ss:$0 sm:$0xff]
  %s28 = scalar_lea.vmem %s1, 8
  %29 = vst [vmem:[%s28] sm:$0x3] %v27
  %s30 = scalar_lea.vmem %s1, 136
  %31 = vst [vmem:[%s30] sm:$0x3] %v27
  %s32 = scalar_lea.vmem %s0, 5
  %v33 = vld [vmem:[%s32] ss:$0 sm:$0xff]
  %s34 = scalar_lea.vmem %s1, 10
  %35 = vst [vmem:[%s34] sm:$0x3] %v33
  %s36 = scalar_lea.vmem %s1, 138
  %37 = vst [vmem:[%s36] sm:$0x3] %v33
  %s38 = scalar_lea.vmem %s0, 6
  %v39 = vld [vmem:[%s38] ss:$0 sm:$0xff]
  %s40 = scalar_lea.vmem %s1, 12
  %41 = vst [vmem:[%s40] sm:$0x3] %v39
  %s42 = scalar_lea.vmem %s1, 140
  %43 = vst [vmem:[%s42] sm:$0x3] %v39
  %s44 = scalar_lea.vmem %s0, 7
  %v45 = vld [vmem:[%s44] ss:$0 sm:$0xff]
  %s46 = scalar_lea.vmem %s1, 14
  %47 = vst [vmem:[%s46] sm:$0x3] %v45
  %s48 = scalar_lea.vmem %s1, 142
  %49 = vst [vmem:[%s48] sm:$0x3] %v45
  %s50 = scalar_lea.vmem %s0, 8
  %v51 = vld [vmem:[%s50] ss:$0 sm:$0xff]
  %s52 = scalar_lea.vmem %s1, 16
  %53 = vst [vmem:[%s52] sm:$0x3] %v51
  %s54 = scalar_lea.vmem %s1, 144
  %55 = vst [vmem:[%s54] sm:$0x3] %v51
  %s56 = scalar_lea.vmem %s0, 8
  %s57 = scalar_lea.vmem %s56, 1
  %v58 = vld [vmem:[%s57] ss:$0 sm:$0xff]
  %s59 = scalar_lea.vmem %s1, 18
  %60 = vst [vmem:[%s59] sm:$0x3] %v58
  %s61 = scalar_lea.vmem %s1, 146
  %62 = vst [vmem:[%s61] sm:$0x3] %v58
  %s63 = scalar_lea.vmem %s0, 8
  %s64 = scalar_lea.vmem %s63, 2
  %v65 = vld [vmem:[%s64] ss:$0 sm:$0xff]
  %s66 = scalar_lea.vmem %s1, 20
  %67 = vst [vmem:[%s66] sm:$0x3] %v65
  %s68 = scalar_lea.vmem %s1, 148
  %69 = vst [vmem:[%s68] sm:$0x3] %v65
  %s70 = scalar_lea.vmem %s0, 8
  %s71 = scalar_lea.vmem %s70, 3
  %v72 = vld [vmem:[%s71] ss:$0 sm:$0xff]
  %s73 = scalar_lea.vmem %s1, 22
  %74 = vst [vmem:[%s73] sm:$0x3] %v72
  %s75 = scalar_lea.vmem %s1, 150
  %76 = vst [vmem:[%s75] sm:$0x3] %v72
  %s77 = scalar_lea.vmem %s0, 8
  %s78 = scalar_lea.vmem %s77, 4
  %v79 = vld [vmem:[%s78] ss:$0 sm:$0xff]
  %s80 = scalar_lea.vmem %s1, 24
  %81 = vst [vmem:[%s80] sm:$0x3] %v79
  %s82 = scalar_lea.vmem %s1, 152
  %83 = vst [vmem:[%s82] sm:$0x3] %v79
  %s84 = scalar_lea.vmem %s0, 8
  %s85 = scalar_lea.vmem %s84, 5
  %v86 = vld [vmem:[%s85] ss:$0 sm:$0xff]
  %s87 = scalar_lea.vmem %s1, 26
  %88 = vst [vmem:[%s87] sm:$0x3] %v86
  %s89 = scalar_lea.vmem %s1, 154
  %90 = vst [vmem:[%s89] sm:$0x3] %v86
  %s91 = scalar_lea.vmem %s0, 8
  %s92 = scalar_lea.vmem %s91, 6
  %v93 = vld [vmem:[%s92] ss:$0 sm:$0xff]
  %s94 = scalar_lea.vmem %s1, 28
  %95 = vst [vmem:[%s94] sm:$0x3] %v93
  %s96 = scalar_lea.vmem %s1, 156
  %97 = vst [vmem:[%s96] sm:$0x3] %v93
  %s98 = scalar_lea.vmem %s0, 8
  %s99 = scalar_lea.vmem %s98, 7
  %v100 = vld [vmem:[%s99] ss:$0 sm:$0xff]
  %s101 = scalar_lea.vmem %s1, 30
  %102 = vst [vmem:[%s101] sm:$0x3] %v100
  %s103 = scalar_lea.vmem %s1, 158
  %104 = vst [vmem:[%s103] sm:$0x3] %v100
  %s105 = scalar_lea.vmem %s0, 16
  %v106 = vld [vmem:[%s105] ss:$0 sm:$0xff]
  %s107 = scalar_lea.vmem %s1, 32
  %108 = vst [vmem:[%s107] sm:$0x3] %v106
  %s109 = scalar_lea.vmem %s1, 160
  %110 = vst [vmem:[%s109] sm:$0x3] %v106
  %s111 = scalar_lea.vmem %s0, 16
  %s112 = scalar_lea.vmem %s111, 1
  %v113 = vld [vmem:[%s112] ss:$0 sm:$0xff]
  %s114 = scalar_lea.vmem %s1, 34
  %115 = vst [vmem:[%s114] sm:$0x3] %v113
  %s116 = scalar_lea.vmem %s1, 162
  %117 = vst [vmem:[%s116] sm:$0x3] %v113
  %s118 = scalar_lea.vmem %s0, 16
  %s119 = scalar_lea.vmem %s118, 2
  %v120 = vld [vmem:[%s119] ss:$0 sm:$0xff]
  %s121 = scalar_lea.vmem %s1, 36
  %122 = vst [vmem:[%s121] sm:$0x3] %v120
  %s123 = scalar_lea.vmem %s1, 164
  %124 = vst [vmem:[%s123] sm:$0x3] %v120
  %s125 = scalar_lea.vmem %s0, 16
  %s126 = scalar_lea.vmem %s125, 3
  %v127 = vld [vmem:[%s126] ss:$0 sm:$0xff]
  %s128 = scalar_lea.vmem %s1, 38
  %129 = vst [vmem:[%s128] sm:$0x3] %v127
  %s130 = scalar_lea.vmem %s1, 166
  %131 = vst [vmem:[%s130] sm:$0x3] %v127
  %s132 = scalar_lea.vmem %s0, 16
  %s133 = scalar_lea.vmem %s132, 4
  %v134 = vld [vmem:[%s133] ss:$0 sm:$0xff]
  %s135 = scalar_lea.vmem %s1, 40
  %136 = vst [vmem:[%s135] sm:$0x3] %v134
  %s137 = scalar_lea.vmem %s1, 168
  %138 = vst [vmem:[%s137] sm:$0x3] %v134
  %s139 = scalar_lea.vmem %s0, 16
  %s140 = scalar_lea.vmem %s139, 5
  %v141 = vld [vmem:[%s140] ss:$0 sm:$0xff]
  %s142 = scalar_lea.vmem %s1, 42
  %143 = vst [vmem:[%s142] sm:$0x3] %v141
  %s144 = scalar_lea.vmem %s1, 170
  %145 = vst [vmem:[%s144] sm:$0x3] %v141
  %s146 = scalar_lea.vmem %s0, 16
  %s147 = scalar_lea.vmem %s146, 6
  %v148 = vld [vmem:[%s147] ss:$0 sm:$0xff]
  %s149 = scalar_lea.vmem %s1, 44
  %150 = vst [vmem:[%s149] sm:$0x3] %v148
  %s151 = scalar_lea.vmem %s1, 172
  %152 = vst [vmem:[%s151] sm:$0x3] %v148
  %s153 = scalar_lea.vmem %s0, 16
  %s154 = scalar_lea.vmem %s153, 7
  %v155 = vld [vmem:[%s154] ss:$0 sm:$0xff]
  %s156 = scalar_lea.vmem %s1, 46
  %157 = vst [vmem:[%s156] sm:$0x3] %v155
  %s158 = scalar_lea.vmem %s1, 174
  %159 = vst [vmem:[%s158] sm:$0x3] %v155
  %s160 = scalar_lea.vmem %s0, 24
  %v161 = vld [vmem:[%s160] ss:$0 sm:$0xff]
  %s162 = scalar_lea.vmem %s1, 48
  %163 = vst [vmem:[%s162] sm:$0x3] %v161
  %s164 = scalar_lea.vmem %s1, 176
  %165 = vst [vmem:[%s164] sm:$0x3] %v161
  %s166 = scalar_lea.vmem %s0, 24
  %s167 = scalar_lea.vmem %s166, 1
  %v168 = vld [vmem:[%s167] ss:$0 sm:$0xff]
  %s169 = scalar_lea.vmem %s1, 50
  %170 = vst [vmem:[%s169] sm:$0x3] %v168
  %s171 = scalar_lea.vmem %s1, 178
  %172 = vst [vmem:[%s171] sm:$0x3] %v168
  %s173 = scalar_lea.vmem %s0, 24
  %s174 = scalar_lea.vmem %s173, 2
  %v175 = vld [vmem:[%s174] ss:$0 sm:$0xff]
  %s176 = scalar_lea.vmem %s1, 52
  %177 = vst [vmem:[%s176] sm:$0x3] %v175
  %s178 = scalar_lea.vmem %s1, 180
  %179 = vst [vmem:[%s178] sm:$0x3] %v175
  %s180 = scalar_lea.vmem %s0, 24
  %s181 = scalar_lea.vmem %s180, 3
  %v182 = vld [vmem:[%s181] ss:$0 sm:$0xff]
  %s183 = scalar_lea.vmem %s1, 54
  %184 = vst [vmem:[%s183] sm:$0x3] %v182
  %s185 = scalar_lea.vmem %s1, 182
  %186 = vst [vmem:[%s185] sm:$0x3] %v182
  %s187 = scalar_lea.vmem %s0, 24
  %s188 = scalar_lea.vmem %s187, 4
  %v189 = vld [vmem:[%s188] ss:$0 sm:$0xff]
  %s190 = scalar_lea.vmem %s1, 56
  %191 = vst [vmem:[%s190] sm:$0x3] %v189
  %s192 = scalar_lea.vmem %s1, 184
  %193 = vst [vmem:[%s192] sm:$0x3] %v189
  %s194 = scalar_lea.vmem %s0, 24
  %s195 = scalar_lea.vmem %s194, 5
  %v196 = vld [vmem:[%s195] ss:$0 sm:$0xff]
  %s197 = scalar_lea.vmem %s1, 58
  %198 = vst [vmem:[%s197] sm:$0x3] %v196
  %s199 = scalar_lea.vmem %s1, 186
  %200 = vst [vmem:[%s199] sm:$0x3] %v196
  %s201 = scalar_lea.vmem %s0, 24
  %s202 = scalar_lea.vmem %s201, 6
  %v203 = vld [vmem:[%s202] ss:$0 sm:$0xff]
  %s204 = scalar_lea.vmem %s1, 60
  %205 = vst [vmem:[%s204] sm:$0x3] %v203
  %s206 = scalar_lea.vmem %s1, 188
  %207 = vst [vmem:[%s206] sm:$0x3] %v203
  %s208 = scalar_lea.vmem %s0, 24
  %s209 = scalar_lea.vmem %s208, 7
  %v210 = vld [vmem:[%s209] ss:$0 sm:$0xff]
  %s211 = scalar_lea.vmem %s1, 62
  %212 = vst [vmem:[%s211] sm:$0x3] %v210
  %s213 = scalar_lea.vmem %s1, 190
  %214 = vst [vmem:[%s213] sm:$0x3] %v210
  %s215 = scalar_lea.vmem %s0, 32
  %v216 = vld [vmem:[%s215] ss:$0 sm:$0xff]
  %s217 = scalar_lea.vmem %s1, 64
  %218 = vst [vmem:[%s217] sm:$0x3] %v216
  %s219 = scalar_lea.vmem %s1, 192
  %220 = vst [vmem:[%s219] sm:$0x3] %v216
  %s221 = scalar_lea.vmem %s0, 32
  %s222 = scalar_lea.vmem %s221, 1
  %v223 = vld [vmem:[%s222] ss:$0 sm:$0xff]
  %s224 = scalar_lea.vmem %s1, 66
  %225 = vst [vmem:[%s224] sm:$0x3] %v223
  %s226 = scalar_lea.vmem %s1, 194
  %227 = vst [vmem:[%s226] sm:$0x3] %v223
  %s228 = scalar_lea.vmem %s0, 32
  %s229 = scalar_lea.vmem %s228, 2
  %v230 = vld [vmem:[%s229] ss:$0 sm:$0xff]
  %s231 = scalar_lea.vmem %s1, 68
  %232 = vst [vmem:[%s231] sm:$0x3] %v230
  %s233 = scalar_lea.vmem %s1, 196
  %234 = vst [vmem:[%s233] sm:$0x3] %v230
  %s235 = scalar_lea.vmem %s0, 32
  %s236 = scalar_lea.vmem %s235, 3
  %v237 = vld [vmem:[%s236] ss:$0 sm:$0xff]
  %s238 = scalar_lea.vmem %s1, 70
  %239 = vst [vmem:[%s238] sm:$0x3] %v237
  %s240 = scalar_lea.vmem %s1, 198
  %241 = vst [vmem:[%s240] sm:$0x3] %v237
  %s242 = scalar_lea.vmem %s0, 32
  %s243 = scalar_lea.vmem %s242, 4
  %v244 = vld [vmem:[%s243] ss:$0 sm:$0xff]
  %s245 = scalar_lea.vmem %s1, 72
  %246 = vst [vmem:[%s245] sm:$0x3] %v244
  %s247 = scalar_lea.vmem %s1, 200
  %248 = vst [vmem:[%s247] sm:$0x3] %v244
  %s249 = scalar_lea.vmem %s0, 32
  %s250 = scalar_lea.vmem %s249, 5
  %v251 = vld [vmem:[%s250] ss:$0 sm:$0xff]
  %s252 = scalar_lea.vmem %s1, 74
  %253 = vst [vmem:[%s252] sm:$0x3] %v251
  %s254 = scalar_lea.vmem %s1, 202
  %255 = vst [vmem:[%s254] sm:$0x3] %v251
  %s256 = scalar_lea.vmem %s0, 32
  %s257 = scalar_lea.vmem %s256, 6
  %v258 = vld [vmem:[%s257] ss:$0 sm:$0xff]
  %s259 = scalar_lea.vmem %s1, 76
  %260 = vst [vmem:[%s259] sm:$0x3] %v258
  %s261 = scalar_lea.vmem %s1, 204
  %262 = vst [vmem:[%s261] sm:$0x3] %v258
  %s263 = scalar_lea.vmem %s0, 32
  %s264 = scalar_lea.vmem %s263, 7
  %v265 = vld [vmem:[%s264] ss:$0 sm:$0xff]
  %s266 = scalar_lea.vmem %s1, 78
  %267 = vst [vmem:[%s266] sm:$0x3] %v265
  %s268 = scalar_lea.vmem %s1, 206
  %269 = vst [vmem:[%s268] sm:$0x3] %v265
  %s270 = scalar_lea.vmem %s0, 40
  %v271 = vld [vmem:[%s270] ss:$0 sm:$0xff]
  %s272 = scalar_lea.vmem %s1, 80
  %273 = vst [vmem:[%s272] sm:$0x3] %v271
  %s274 = scalar_lea.vmem %s1, 208
  %275 = vst [vmem:[%s274] sm:$0x3] %v271
  %s276 = scalar_lea.vmem %s0, 40
  %s277 = scalar_lea.vmem %s276, 1
  %v278 = vld [vmem:[%s277] ss:$0 sm:$0xff]
  %s279 = scalar_lea.vmem %s1, 82
  %280 = vst [vmem:[%s279] sm:$0x3] %v278
  %s281 = scalar_lea.vmem %s1, 210
  %282 = vst [vmem:[%s281] sm:$0x3] %v278
  %s283 = scalar_lea.vmem %s0, 40
  %s284 = scalar_lea.vmem %s283, 2
  %v285 = vld [vmem:[%s284] ss:$0 sm:$0xff]
  %s286 = scalar_lea.vmem %s1, 84
  %287 = vst [vmem:[%s286] sm:$0x3] %v285
  %s288 = scalar_lea.vmem %s1, 212
  %289 = vst [vmem:[%s288] sm:$0x3] %v285
  %s290 = scalar_lea.vmem %s0, 40
  %s291 = scalar_lea.vmem %s290, 3
  %v292 = vld [vmem:[%s291] ss:$0 sm:$0xff]
  %s293 = scalar_lea.vmem %s1, 86
  %294 = vst [vmem:[%s293] sm:$0x3] %v292
  %s295 = scalar_lea.vmem %s1, 214
  %296 = vst [vmem:[%s295] sm:$0x3] %v292
  %s297 = scalar_lea.vmem %s0, 40
  %s298 = scalar_lea.vmem %s297, 4
  %v299 = vld [vmem:[%s298] ss:$0 sm:$0xff]
  %s300 = scalar_lea.vmem %s1, 88
  %301 = vst [vmem:[%s300] sm:$0x3] %v299
  %s302 = scalar_lea.vmem %s1, 216
  %303 = vst [vmem:[%s302] sm:$0x3] %v299
  %s304 = scalar_lea.vmem %s0, 40
  %s305 = scalar_lea.vmem %s304, 5
  %v306 = vld [vmem:[%s305] ss:$0 sm:$0xff]
  %s307 = scalar_lea.vmem %s1, 90
  %308 = vst [vmem:[%s307] sm:$0x3] %v306
  %s309 = scalar_lea.vmem %s1, 218
  %310 = vst [vmem:[%s309] sm:$0x3] %v306
  %s311 = scalar_lea.vmem %s0, 40
  %s312 = scalar_lea.vmem %s311, 6
  %v313 = vld [vmem:[%s312] ss:$0 sm:$0xff]
  %s314 = scalar_lea.vmem %s1, 92
  %315 = vst [vmem:[%s314] sm:$0x3] %v313
  %s316 = scalar_lea.vmem %s1, 220
  %317 = vst [vmem:[%s316] sm:$0x3] %v313
  %s318 = scalar_lea.vmem %s0, 40
  %s319 = scalar_lea.vmem %s318, 7
  %v320 = vld [vmem:[%s319] ss:$0 sm:$0xff]
  %s321 = scalar_lea.vmem %s1, 94
  %322 = vst [vmem:[%s321] sm:$0x3] %v320
  %s323 = scalar_lea.vmem %s1, 222
  %324 = vst [vmem:[%s323] sm:$0x3] %v320
  %s325 = scalar_lea.vmem %s0, 48
  %v326 = vld [vmem:[%s325] ss:$0 sm:$0xff]
  %s327 = scalar_lea.vmem %s1, 96
  %328 = vst [vmem:[%s327] sm:$0x3] %v326
  %s329 = scalar_lea.vmem %s1, 224
  %330 = vst [vmem:[%s329] sm:$0x3] %v326
  %s331 = scalar_lea.vmem %s0, 48
  %s332 = scalar_lea.vmem %s331, 1
  %v333 = vld [vmem:[%s332] ss:$0 sm:$0xff]
  %s334 = scalar_lea.vmem %s1, 98
  %335 = vst [vmem:[%s334] sm:$0x3] %v333
  %s336 = scalar_lea.vmem %s1, 226
  %337 = vst [vmem:[%s336] sm:$0x3] %v333
  %s338 = scalar_lea.vmem %s0, 48
  %s339 = scalar_lea.vmem %s338, 2
  %v340 = vld [vmem:[%s339] ss:$0 sm:$0xff]
  %s341 = scalar_lea.vmem %s1, 100
  %342 = vst [vmem:[%s341] sm:$0x3] %v340
  %s343 = scalar_lea.vmem %s1, 228
  %344 = vst [vmem:[%s343] sm:$0x3] %v340
  %s345 = scalar_lea.vmem %s0, 48
  %s346 = scalar_lea.vmem %s345, 3
  %v347 = vld [vmem:[%s346] ss:$0 sm:$0xff]
  %s348 = scalar_lea.vmem %s1, 102
  %349 = vst [vmem:[%s348] sm:$0x3] %v347
  %s350 = scalar_lea.vmem %s1, 230
  %351 = vst [vmem:[%s350] sm:$0x3] %v347
  %s352 = scalar_lea.vmem %s0, 48
  %s353 = scalar_lea.vmem %s352, 4
  %v354 = vld [vmem:[%s353] ss:$0 sm:$0xff]
  %s355 = scalar_lea.vmem %s1, 104
  %356 = vst [vmem:[%s355] sm:$0x3] %v354
  %s357 = scalar_lea.vmem %s1, 232
  %358 = vst [vmem:[%s357] sm:$0x3] %v354
  %s359 = scalar_lea.vmem %s0, 48
  %s360 = scalar_lea.vmem %s359, 5
  %v361 = vld [vmem:[%s360] ss:$0 sm:$0xff]
  %s362 = scalar_lea.vmem %s1, 106
  %363 = vst [vmem:[%s362] sm:$0x3] %v361
  %s364 = scalar_lea.vmem %s1, 234
  %365 = vst [vmem:[%s364] sm:$0x3] %v361
  %s366 = scalar_lea.vmem %s0, 48
  %s367 = scalar_lea.vmem %s366, 6
  %v368 = vld [vmem:[%s367] ss:$0 sm:$0xff]
  %s369 = scalar_lea.vmem %s1, 108
  %370 = vst [vmem:[%s369] sm:$0x3] %v368
  %s371 = scalar_lea.vmem %s1, 236
  %372 = vst [vmem:[%s371] sm:$0x3] %v368
  %s373 = scalar_lea.vmem %s0, 48
  %s374 = scalar_lea.vmem %s373, 7
  %v375 = vld [vmem:[%s374] ss:$0 sm:$0xff]
  %s376 = scalar_lea.vmem %s1, 110
  %377 = vst [vmem:[%s376] sm:$0x3] %v375
  %s378 = scalar_lea.vmem %s1, 238
  %379 = vst [vmem:[%s378] sm:$0x3] %v375
  %s380 = scalar_lea.vmem %s0, 56
  %v381 = vld [vmem:[%s380] ss:$0 sm:$0xff]
  %s382 = scalar_lea.vmem %s1, 112
  %383 = vst [vmem:[%s382] sm:$0x3] %v381
  %s384 = scalar_lea.vmem %s1, 240
  %385 = vst [vmem:[%s384] sm:$0x3] %v381
  %s386 = scalar_lea.vmem %s0, 56
  %s387 = scalar_lea.vmem %s386, 1
  %v388 = vld [vmem:[%s387] ss:$0 sm:$0xff]
  %s389 = scalar_lea.vmem %s1, 114
  %390 = vst [vmem:[%s389] sm:$0x3] %v388
  %s391 = scalar_lea.vmem %s1, 242
  %392 = vst [vmem:[%s391] sm:$0x3] %v388
  %s393 = scalar_lea.vmem %s0, 56
  %s394 = scalar_lea.vmem %s393, 2
  %v395 = vld [vmem:[%s394] ss:$0 sm:$0xff]
  %s396 = scalar_lea.vmem %s1, 116
  %397 = vst [vmem:[%s396] sm:$0x3] %v395
  %s398 = scalar_lea.vmem %s1, 244
  %399 = vst [vmem:[%s398] sm:$0x3] %v395
  %s400 = scalar_lea.vmem %s0, 56
  %s401 = scalar_lea.vmem %s400, 3
  %v402 = vld [vmem:[%s401] ss:$0 sm:$0xff]
  %s403 = scalar_lea.vmem %s1, 118
  %404 = vst [vmem:[%s403] sm:$0x3] %v402
  %s405 = scalar_lea.vmem %s1, 246
  %406 = vst [vmem:[%s405] sm:$0x3] %v402
  %s407 = scalar_lea.vmem %s0, 56
  %s408 = scalar_lea.vmem %s407, 4
  %v409 = vld [vmem:[%s408] ss:$0 sm:$0xff]
  %s410 = scalar_lea.vmem %s1, 120
  %411 = vst [vmem:[%s410] sm:$0x3] %v409
  %s412 = scalar_lea.vmem %s1, 248
  %413 = vst [vmem:[%s412] sm:$0x3] %v409
  %s414 = scalar_lea.vmem %s0, 56
  %s415 = scalar_lea.vmem %s414, 5
  %v416 = vld [vmem:[%s415] ss:$0 sm:$0xff]
  %s417 = scalar_lea.vmem %s1, 122
  %418 = vst [vmem:[%s417] sm:$0x3] %v416
  %s419 = scalar_lea.vmem %s1, 250
  %420 = vst [vmem:[%s419] sm:$0x3] %v416
  %s421 = scalar_lea.vmem %s0, 56
  %s422 = scalar_lea.vmem %s421, 6
  %v423 = vld [vmem:[%s422] ss:$0 sm:$0xff]
  %s424 = scalar_lea.vmem %s1, 124
  %425 = vst [vmem:[%s424] sm:$0x3] %v423
  %s426 = scalar_lea.vmem %s1, 252
  %427 = vst [vmem:[%s426] sm:$0x3] %v423
  %s428 = scalar_lea.vmem %s0, 56
  %s429 = scalar_lea.vmem %s428, 7
  %v430 = vld [vmem:[%s429] ss:$0 sm:$0xff]
  %s431 = scalar_lea.vmem %s1, 126
  %432 = vst [vmem:[%s431] sm:$0x3] %v430
  %s433 = scalar_lea.vmem %s1, 254
  %434 = vst [vmem:[%s433] sm:$0x3] %v430

// kernel: rel_pos_emb.1
$region0: #{rel_pos_emb.1}
  #allocation0 [shape = 'u32[]', space=smem, size = 0x4, offset = 0x4, fixed_abs, tag = 'smem constant byte address 0x4 - core index']
  #allocation1 [shape = 'u32[72,128]{1,0:T(1,128)}', space=vmem, size = 0x9000, scoped, tag = 'internal scratch']
  %s0 = inlined_call_operand.vmem [shape: f32[256,64], index: 0, kind: input, shape index: {}]
  %s1 = inlined_call_operand.vmem [shape: f32[64,256], index: 1, kind: input, shape index: {}]
  %s2 = inlined_call_operand.vmem [shape: f32[128,256], index: 2, kind: input, shape index: {}]
  %s3 = inlined_call_operand.vmem [shape: f32[256,128], index: 3, kind: input, shape index: {}]
  %s4 = inlined_call_operand.vmem [shape: f32[256,128], index: 4, kind: output, shape index: {}]
  %s5 = sld [smem:[#allocation0]]
  $region49: #{rel_pos_emb.1} parent=0
    _
  %s7 = ssub.s32 1, %s5
  %s8 = scalar_select 0, %s7, %s5
  loop: start=0, step=1, limit=4
  $region2: #{rel_pos_emb.1} parent=0 // loop_pre_header
    _
  $region3: #{rel_pos_emb.1} parent=0 // loop_header
    %s10 = sphi 0, %s14
    %p11 = scmp.ge.s32.totalorder %s10, 4
    %s20 = sphi 0, %s22
    %s23 = sphi 0, %s20
    %s24 = sphi 0, %s23
    %s40 = sphi 0, %s24
    %s44 = sphi 0, %s44
    %s46 = sphi 0, %s44
    %s47 = sphi 0, %s46
    %s61 = sphi 0, %s47
    %s65 = sphi 0, %s65
    %s67 = sphi 0, %s65
    %s68 = sphi 0, %s67
    %s82 = sphi 0, %s68
    %s86 = sphi 0, %s86
    %s88 = sphi 0, %s86
    %s89 = sphi 0, %s88
    %s103 = sphi 0, %s89
    %s109 = sphi 0, %s111
    %s112 = sphi 0, %s109
    %s113 = sphi 0, %s112
    %s129 = sphi 0, %s113
  $region4: #{rel_pos_emb.1} parent=0 // loop_header_branch
    %13 = sbr.rel (%p11) target = $region8
  $region5: #{rel_pos_emb.1} parent=0 // loop_body
    %s15 = ssub.s32 %s10, 1
    %s16 = ssub.s32 %s10, 2
    %s17 = sadd.s32 %s10, 1
    %s18 = ssub.s32 %s10, %s17
    %p19 = scmp.eq.s32.totalorder %s18, 0
    %s21 = sadd.s32 %s20, 1
    %s22 = scalar_select %p19, %s20, %s21
    %p25 = pneg %p19
    %p26 = scmp.eq.s32.totalorder %s10, 1
    %p27 = por %p25, %p26
    %p28 = scmp.ne.s32.totalorder %s20, %s23
    %p29 = scmp.eq.s32.totalorder %s10, 0
    %p30 = por %p28, %p29
    %p31 = scmp.ne.s32.totalorder %s20, %s23
    %p32 = scmp.eq.s32.totalorder %s15, 1
    %p33 = por %p31, %p32
    %p34 = scmp.ne.s32.totalorder %s23, %s24
    %p35 = scmp.eq.s32.totalorder %s15, 0
    %p36 = por %p34, %p35
    %p37 = scmp.ne.s32.totalorder %s23, %s24
    %p38 = scmp.eq.s32.totalorder %s16, 1
    %p39 = por %p37, %p38
    %p41 = scmp.ne.s32.totalorder %s24, %s40
    %p42 = scmp.eq.s32.totalorder %s16, 0
    %p43 = por %p41, %p42
    %s45 = sadd.s32 %s44, 1
    %p48 = scmp.eq.s32.totalorder %s10, 1
    %p49 = scmp.ne.s32.totalorder %s44, %s46
    %p50 = scmp.eq.s32.totalorder %s10, 0
    %p51 = por %p49, %p50
    %p52 = scmp.ne.s32.totalorder %s44, %s46
    %p53 = scmp.eq.s32.totalorder %s15, 1
    %p54 = por %p52, %p53
    %p55 = scmp.ne.s32.totalorder %s46, %s47
    %p56 = scmp.eq.s32.totalorder %s15, 0
    %p57 = por %p55, %p56
    %p58 = scmp.ne.s32.totalorder %s46, %s47
    %p59 = scmp.eq.s32.totalorder %s16, 1
    %p60 = por %p58, %p59
    %p62 = scmp.ne.s32.totalorder %s47, %s61
    %p63 = scmp.eq.s32.totalorder %s16, 0
    %p64 = por %p62, %p63
    %s66 = sadd.s32 %s65, 1
    %p69 = scmp.eq.s32.totalorder %s10, 1
    %p70 = scmp.ne.s32.totalorder %s65, %s67
    %p71 = scmp.eq.s32.totalorder %s10, 0
    %p72 = por %p70, %p71
    %p73 = scmp.ne.s32.totalorder %s65, %s67
    %p74 = scmp.eq.s32.totalorder %s15, 1
    %p75 = por %p73, %p74
    %p76 = scmp.ne.s32.totalorder %s67, %s68
    %p77 = scmp.eq.s32.totalorder %s15, 0
    %p78 = por %p76, %p77
    %p79 = scmp.ne.s32.totalorder %s67, %s68
    %p80 = scmp.eq.s32.totalorder %s16, 1
    %p81 = por %p79, %p80
    %p83 = scmp.ne.s32.totalorder %s68, %s82
    %p84 = scmp.eq.s32.totalorder %s16, 0
    %p85 = por %p83, %p84
    %s87 = sadd.s32 %s86, 1
    %p90 = scmp.eq.s32.totalorder %s10, 1
    %p91 = scmp.ne.s32.totalorder %s86, %s88
    %p92 = scmp.eq.s32.totalorder %s10, 0
    %p93 = por %p91, %p92
    %p94 = scmp.ne.s32.totalorder %s86, %s88
    %p95 = scmp.eq.s32.totalorder %s15, 1
    %p96 = por %p94, %p95
    %p97 = scmp.ne.s32.totalorder %s88, %s89
    %p98 = scmp.eq.s32.totalorder %s15, 0
    %p99 = por %p97, %p98
    %p100 = scmp.ne.s32.totalorder %s88, %s89
    %p101 = scmp.eq.s32.totalorder %s16, 1
    %p102 = por %p100, %p101
    %p104 = scmp.ne.s32.totalorder %s89, %s103
    %p105 = scmp.eq.s32.totalorder %s16, 0
    %p106 = por %p104, %p105
    %s107 = ssub.s32 %s10, %s17
    %p108 = scmp.eq.s32.totalorder %s107, 0
    %s110 = sadd.s32 %s109, 1
    %s111 = scalar_select %p108, %s109, %s110
    %p114 = pneg %p108
    %p115 = scmp.eq.s32.totalorder %s10, 1
    %p116 = por %p114, %p115
    %p117 = scmp.ne.s32.totalorder %s109, %s112
    %p118 = scmp.eq.s32.totalorder %s10, 0
    %p119 = por %p117, %p118
    %p120 = scmp.ne.s32.totalorder %s109, %s112
    %p121 = scmp.eq.s32.totalorder %s15, 1
    %p122 = por %p120, %p121
    %p123 = scmp.ne.s32.totalorder %s112, %s113
    %p124 = scmp.eq.s32.totalorder %s15, 0
    %p125 = por %p123, %p124
    %p126 = scmp.ne.s32.totalorder %s112, %s113
    %p127 = scmp.eq.s32.totalorder %s16, 1
    %p128 = por %p126, %p127
    %p130 = scmp.ne.s32.totalorder %s113, %s129
    %p131 = scmp.eq.s32.totalorder %s16, 0
    %p132 = por %p130, %p131
    %p133 = scmp.le.s32.totalorder 1, %s10
    %p134 = scmp.lt.s32.totalorder %s10, 3
    %p135 = pnand %p133, %p134
    %p136 = pneg %p135
    // Predicated region
    $region9: #{rel_pos_emb.1} parent=5 // pred_check
      _
    $region10: #{rel_pos_emb.1} parent=5 // pred_check_branch
      %138 = sbr.rel (%p135) target = $region12
    $region11: #{rel_pos_emb.1} parent=5 // pred_region
      %s139 = ssub.s32 %s10, 1
      // Predicated region
      $region13: #{rel_pos_emb.1} parent=11 // pred_check
        %p140 = pneg %p57
      $region14: #{rel_pos_emb.1} parent=11 // pred_check_branch
        %142 = sbr.rel (%p140) target = $region16
      $region15: #{rel_pos_emb.1} parent=11 // pred_region
        _
      $region16: #{rel_pos_emb.1} parent=11 // pred_fallthru
        _
      // Predicated region
      $region17: #{rel_pos_emb.1} parent=11 // pred_check
        %p143 = pneg %p78
      $region18: #{rel_pos_emb.1} parent=11 // pred_check_branch
        %145 = sbr.rel (%p143) target = $region20
      $region19: #{rel_pos_emb.1} parent=11 // pred_region
        _
      $region20: #{rel_pos_emb.1} parent=11 // pred_fallthru
        _
      // Predicated region
      $region21: #{rel_pos_emb.1} parent=11 // pred_check
        %p146 = pneg %p99
      $region22: #{rel_pos_emb.1} parent=11 // pred_check_branch
        %148 = sbr.rel (%p146) target = $region24
      $region23: #{rel_pos_emb.1} parent=11 // pred_region
        _
      $region24: #{rel_pos_emb.1} parent=11 // pred_fallthru
        _
    $region12: #{rel_pos_emb.1} parent=5 // pred_fallthru
      _
    %p149 = scmp.lt.s32.totalorder %s10, 2
    // Predicated region
    $region25: #{rel_pos_emb.1} parent=5 // pred_check
      %p150 = pneg %p149
    $region26: #{rel_pos_emb.1} parent=5 // pred_check_branch
      %152 = sbr.rel (%p150) target = $region28
    $region27: #{rel_pos_emb.1} parent=5 // pred_region
      // Predicated region
      $region29: #{rel_pos_emb.1} parent=27 // pred_check
        %p153 = pneg %p30
      $region30: #{rel_pos_emb.1} parent=27 // pred_check_branch
        %155 = sbr.rel (%p153) target = $region32
      $region31: #{rel_pos_emb.1} parent=27 // pred_region
        %s156 = smul.u32 16, %s10
        %p157 = scmp.lt.s32.totalorder %s156, 31
        %s158 = scalar_select %p157, %s156, 31
        %s159 = smul.addr %s158, 8
        %s160 = scalar_lea.vmem %s0, %s159
        %s161 = smul.u32 16, %s10
      $region32: #{rel_pos_emb.1} parent=27 // pred_fallthru
        _
    $region28: #{rel_pos_emb.1} parent=5 // pred_fallthru
      _
    %p162 = scmp.le.s32.totalorder 1, %s10
    %p163 = scmp.lt.s32.totalorder %s10, 3
    %p164 = pnand %p162, %p163
    %p165 = pneg %p164
    // Predicated region
    $region33: #{rel_pos_emb.1} parent=5 // pred_check
      _
    $region34: #{rel_pos_emb.1} parent=5 // pred_check_branch
      %167 = sbr.rel (%p164) target = $region36
    $region35: #{rel_pos_emb.1} parent=5 // pred_region
      %s168 = ssub.s32 %s10, 1
      %s169 = smul.u32 16, %s15
      %p170 = scmp.lt.s32.totalorder %s169, 31
      %s171 = scalar_select %p170, %s169, 31
      %s172 = smul.addr %s171, 8
      %s173 = scalar_lea.vmem %s0, %s172
      %p174 = pneg %p36
      %p175 = pneg %p33
      %p176 = pneg %p57
      %p177 = pneg %p54
      %p178 = pneg %p78
      %p179 = pneg %p75
      %p180 = pneg %p99
      %p181 = pneg %p96
      %p182 = pneg %p125
      %p183 = pneg %p122
      %s184 = smul.u32 16, %s15
      %p185 = scmp.lt.s32.totalorder %s184, 31
      %s186 = scalar_select %p185, %s184, 31
      %s187 = smul.addr %s186, 8
      %s188 = scalar_lea.vmem %s4, %s187
      %s189 = smul.u32 16, %s15
      %p190 = scmp.lt.s32.totalorder %s189, 31
      %s191 = scalar_select %p190, %s189, 31
      %s192 = smul.addr %s191, 8
      %s193 = scalar_lea.vmem %s0, %s192
      %s194 = smul.u32 16, %s15
      %s195 = smul.u32 16, %s15
      %p196 = scmp.lt.s32.totalorder %s195, 31
      %s197 = scalar_select %p196, %s195, 31
      %s198 = smul.addr %s197, 8
      %s199 = scalar_lea.vmem %s4, %s198
      %s200 = smul.u32 16, %s15
      %v201 = vld [vmem:[%s193] sm:$0xff]
      %v202 = vld [vmem:[%s193 + $0x8] sm:$0xff]
      %v203 = vld [vmem:[%s193 + $0x10] sm:$0xff]
      %v204 = vld [vmem:[%s193 + $0x18] sm:$0xff]
      %v205 = vld [vmem:[%s193 + $0x20] sm:$0xff]
      %v206 = vld [vmem:[%s193 + $0x28] sm:$0xff]
      %v207 = vld [vmem:[%s193 + $0x30] sm:$0xff]
      %v208 = vld [vmem:[%s193 + $0x38] sm:$0xff]
      %v209 = vld [vmem:[%s193 + $0x40] sm:$0xff]
      %v210 = vld [vmem:[%s193 + $0x48] sm:$0xff]
      %v211 = vld [vmem:[%s193 + $0x50] sm:$0xff]
      %v212 = vld [vmem:[%s193 + $0x58] sm:$0xff]
      %v213 = vld [vmem:[%s193 + $0x60] sm:$0xff]
      %v214 = vld [vmem:[%s193 + $0x68] sm:$0xff]
      %v215 = vld [vmem:[%s193 + $0x70] sm:$0xff]
      %v216 = vld [vmem:[%s193 + $0x78] sm:$0xff]
      %v217 = vld [vmem:[%s1] sm:$0xff]
      %v218 = vld [vmem:[%s1 + $0x8] sm:$0xff]
      %v219 = vld [vmem:[%s1 + $0x10] sm:$0xff]
      %v220 = vld [vmem:[%s1 + $0x18] sm:$0xff]
      %v221 = vld [vmem:[%s1 + $0x20] sm:$0xff]
      %v222 = vld [vmem:[%s1 + $0x28] sm:$0xff]
      %v223 = vld [vmem:[%s1 + $0x30] sm:$0xff]
      %v224 = vld [vmem:[%s1 + $0x38] sm:$0xff]
      %v225 = vld [vmem:[%s1 + $0x40] sm:$0xff]
      %v226 = vld [vmem:[%s1 + $0x48] sm:$0xff]
      %v227 = vld [vmem:[%s1 + $0x50] sm:$0xff]
      %v228 = vld [vmem:[%s1 + $0x58] sm:$0xff]
      %v229 = vld [vmem:[%s1 + $0x60] sm:$0xff]
      %v230 = vld [vmem:[%s1 + $0x68] sm:$0xff]
      %v231 = vld [vmem:[%s1 + $0x70] sm:$0xff]
      %v232 = vld [vmem:[%s1 + $0x78] sm:$0xff]
      %vm233 = vcmask 523264
      %v235 = vsel %vm233, %v201, 0
      %v238 = vsel %vm233, %v202, 0
      %v241 = vsel %vm233, %v203, 0
      %v244 = vsel %vm233, %v204, 0
      %v247 = vsel %vm233, %v205, 0
      %v250 = vsel %vm233, %v206, 0
      %v253 = vsel %vm233, %v207, 0
      %v256 = vsel %vm233, %v208, 0
      %v259 = vsel %vm233, %v209, 0
      %v262 = vsel %vm233, %v210, 0
      %v265 = vsel %vm233, %v211, 0
      %v268 = vsel %vm233, %v212, 0
      %v271 = vsel %vm233, %v213, 0
      %v274 = vsel %vm233, %v214, 0
      %v277 = vsel %vm233, %v215, 0
      %v280 = vsel %vm233, %v216, 0
      %282 = vmatpush.msra.mxu0 0.0
      %283 = vmatpush.msra.mxu0 0.0
      %284 = vmatpush.msra.mxu0 0.0
      %285 = vmatpush.msra.mxu0 0.0
      %286 = vmatpush.msra.mxu0 0.0
      %287 = vmatpush.msra.mxu0 0.0
      %288 = vmatpush.msra.mxu0 0.0
      %289 = vmatpush.msra.mxu0 0.0
      %290 = vmatpush.msra.mxu0 %v231
      %291 = vmatpush.msra.mxu0 %v229
      %292 = vmatpush.msra.mxu0 %v227
      %293 = vmatpush.msra.mxu0 %v225
      %294 = vmatpush.msra.mxu0 %v223
      %295 = vmatpush.msra.mxu0 %v221
      %296 = vmatpush.msra.mxu0 %v219
      %297 = vmatpush.msra.mxu0 %v217
      %298 = vmatmul.f32.gmra.mxu0 %v235
      %v299 = vpop.f32.mrf.mxu0
      %v300 = vadd.f32 0.0, %v299
      %301 = vmatmul.f32.gmra.mxu0 %v238
      %v302 = vpop.f32.mrf.mxu0
      %v303 = vadd.f32 0.0, %v302
      %304 = vmatmul.f32.gmra.mxu0 %v241
      %v305 = vpop.f32.mrf.mxu0
      %v306 = vadd.f32 0.0, %v305
      %307 = vmatmul.f32.gmra.mxu0 %v244
      %v308 = vpop.f32.mrf.mxu0
      %v309 = vadd.f32 0.0, %v308
      %310 = vmatmul.f32.gmra.mxu0 %v247
      %v311 = vpop.f32.mrf.mxu0
      %v312 = vadd.f32 0.0, %v311
      %313 = vmatmul.f32.gmra.mxu0 %v250
      %v314 = vpop.f32.mrf.mxu0
      %v315 = vadd.f32 0.0, %v314
      %316 = vmatmul.f32.gmra.mxu0 %v253
      %v317 = vpop.f32.mrf.mxu0
      %v318 = vadd.f32 0.0, %v317
      %319 = vmatmul.f32.gmra.mxu0 %v256
      %v320 = vpop.f32.mrf.mxu0
      %v321 = vadd.f32 0.0, %v320
      %322 = vmatmul.f32.gmra.mxu0 %v259
      %v323 = vpop.f32.mrf.mxu0
      %v324 = vadd.f32 0.0, %v323
      %325 = vmatmul.f32.gmra.mxu0 %v262
      %v326 = vpop.f32.mrf.mxu0
      %v327 = vadd.f32 0.0, %v326
      %328 = vmatmul.f32.gmra.mxu0 %v265
      %v329 = vpop.f32.mrf.mxu0
      %v330 = vadd.f32 0.0, %v329
      %331 = vmatmul.f32.gmra.mxu0 %v268
      %v332 = vpop.f32.mrf.mxu0
      %v333 = vadd.f32 0.0, %v332
      %334 = vmatmul.f32.gmra.mxu0 %v271
      %v335 = vpop.f32.mrf.mxu0
      %v336 = vadd.f32 0.0, %v335
      %337 = vmatmul.f32.gmra.mxu0 %v274
      %v338 = vpop.f32.mrf.mxu0
      %v339 = vadd.f32 0.0, %v338
      %340 = vmatmul.f32.gmra.mxu0 %v277
      %v341 = vpop.f32.mrf.mxu0
      %v342 = vadd.f32 0.0, %v341
      %343 = vmatmul.f32.gmra.mxu0 %v280
      %v344 = vpop.f32.mrf.mxu0
      %v345 = vadd.f32 0.0, %v344
      %346 = vdwg.mxu0
      %347 = vmatpush.msra.mxu0 0.0
      %348 = vmatpush.msra.mxu0 0.0
      %349 = vmatpush.msra.mxu0 0.0
      %350 = vmatpush.msra.mxu0 0.0
      %351 = vmatpush.msra.mxu0 0.0
      %352 = vmatpush.msra.mxu0 0.0
      %353 = vmatpush.msra.mxu0 0.0
      %354 = vmatpush.msra.mxu0 0.0
      %355 = vmatpush.msra.mxu0 %v232
      %356 = vmatpush.msra.mxu0 %v230
      %357 = vmatpush.msra.mxu0 %v228
      %358 = vmatpush.msra.mxu0 %v226
      %359 = vmatpush.msra.mxu0 %v224
      %360 = vmatpush.msra.mxu0 %v222
      %361 = vmatpush.msra.mxu0 %v220
      %362 = vmatpush.msra.mxu0 %v218
      %363 = vmatmul.f32.gmra.mxu0 %v235
      %v364 = vpop.f32.mrf.mxu0
      %v365 = vadd.f32 0.0, %v364
      %366 = vmatmul.f32.gmra.mxu0 %v238
      %v367 = vpop.f32.mrf.mxu0
      %v368 = vadd.f32 0.0, %v367
      %369 = vmatmul.f32.gmra.mxu0 %v241
      %v370 = vpop.f32.mrf.mxu0
      %v371 = vadd.f32 0.0, %v370
      %372 = vmatmul.f32.gmra.mxu0 %v244
      %v373 = vpop.f32.mrf.mxu0
      %v374 = vadd.f32 0.0, %v373
      %375 = vmatmul.f32.gmra.mxu0 %v247
      %v376 = vpop.f32.mrf.mxu0
      %v377 = vadd.f32 0.0, %v376
      %378 = vmatmul.f32.gmra.mxu0 %v250
      %v379 = vpop.f32.mrf.mxu0
      %v380 = vadd.f32 0.0, %v379
      %381 = vmatmul.f32.gmra.mxu0 %v253
      %v382 = vpop.f32.mrf.mxu0
      %v383 = vadd.f32 0.0, %v382
      %384 = vmatmul.f32.gmra.mxu0 %v256
      %v385 = vpop.f32.mrf.mxu0
      %v386 = vadd.f32 0.0, %v385
      %387 = vmatmul.f32.gmra.mxu0 %v259
      %v388 = vpop.f32.mrf.mxu0
      %v389 = vadd.f32 0.0, %v388
      %390 = vmatmul.f32.gmra.mxu0 %v262
      %v391 = vpop.f32.mrf.mxu0
      %v392 = vadd.f32 0.0, %v391
      %393 = vmatmul.f32.gmra.mxu0 %v265
      %v394 = vpop.f32.mrf.mxu0
      %v395 = vadd.f32 0.0, %v394
      %396 = vmatmul.f32.gmra.mxu0 %v268
      %v397 = vpop.f32.mrf.mxu0
      %v398 = vadd.f32 0.0, %v397
      %399 = vmatmul.f32.gmra.mxu0 %v271
      %v400 = vpop.f32.mrf.mxu0
      %v401 = vadd.f32 0.0, %v400
      %402 = vmatmul.f32.gmra.mxu0 %v274
      %v403 = vpop.f32.mrf.mxu0
      %v404 = vadd.f32 0.0, %v403
      %405 = vmatmul.f32.gmra.mxu0 %v277
      %v406 = vpop.f32.mrf.mxu0
      %v407 = vadd.f32 0.0, %v406
      %408 = vmatmul.f32.gmra.mxu0 %v280
      %v409 = vpop.f32.mrf.mxu0
      %v410 = vadd.f32 0.0, %v409
      %411 = vdwg.mxu0
      %v412 = vld [vmem:[%s2] sm:$0xff]
      %v413 = vld [vmem:[%s2 + $0x8] sm:$0xff]
      %v414 = vld [vmem:[%s2 + $0x10] sm:$0xff]
      %v415 = vld [vmem:[%s2 + $0x18] sm:$0xff]
      %v416 = vld [vmem:[%s2 + $0x20] sm:$0xff]
      %v417 = vld [vmem:[%s2 + $0x28] sm:$0xff]
      %v418 = vld [vmem:[%s2 + $0x30] sm:$0xff]
      %v419 = vld [vmem:[%s2 + $0x38] sm:$0xff]
      %v420 = vld [vmem:[%s2 + $0x40] sm:$0xff]
      %v421 = vld [vmem:[%s2 + $0x48] sm:$0xff]
      %v422 = vld [vmem:[%s2 + $0x50] sm:$0xff]
      %v423 = vld [vmem:[%s2 + $0x58] sm:$0xff]
      %v424 = vld [vmem:[%s2 + $0x60] sm:$0xff]
      %v425 = vld [vmem:[%s2 + $0x68] sm:$0xff]
      %v426 = vld [vmem:[%s2 + $0x70] sm:$0xff]
      %v427 = vld [vmem:[%s2 + $0x78] sm:$0xff]
      %v428 = vld [vmem:[%s2 + $0x80] sm:$0xff]
      %v429 = vld [vmem:[%s2 + $0x88] sm:$0xff]
      %v430 = vld [vmem:[%s2 + $0x90] sm:$0xff]
      %v431 = vld [vmem:[%s2 + $0x98] sm:$0xff]
      %v432 = vld [vmem:[%s2 + $0xa0] sm:$0xff]
      %v433 = vld [vmem:[%s2 + $0xa8] sm:$0xff]
      %v434 = vld [vmem:[%s2 + $0xb0] sm:$0xff]
      %v435 = vld [vmem:[%s2 + $0xb8] sm:$0xff]
      %v436 = vld [vmem:[%s2 + $0xc0] sm:$0xff]
      %v437 = vld [vmem:[%s2 + $0xc8] sm:$0xff]
      %v438 = vld [vmem:[%s2 + $0xd0] sm:$0xff]
      %v439 = vld [vmem:[%s2 + $0xd8] sm:$0xff]
      %v440 = vld [vmem:[%s2 + $0xe0] sm:$0xff]
      %v441 = vld [vmem:[%s2 + $0xe8] sm:$0xff]
      %v442 = vld [vmem:[%s2 + $0xf0] sm:$0xff]
      %v443 = vld [vmem:[%s2 + $0xf8] sm:$0xff]
      %v444 = vmul.f32 %v300, %v412
      %v445 = vmul.f32 %v365, %v413
      %v446 = vmul.f32 %v303, %v414
      %v447 = vmul.f32 %v368, %v415
      %v448 = vmul.f32 %v306, %v416
      %v449 = vmul.f32 %v371, %v417
      %v450 = vmul.f32 %v309, %v418
      %v451 = vmul.f32 %v374, %v419
      %v452 = vmul.f32 %v312, %v420
      %v453 = vmul.f32 %v377, %v421
      %v454 = vmul.f32 %v315, %v422
      %v455 = vmul.f32 %v380, %v423
      %v456 = vmul.f32 %v318, %v424
      %v457 = vmul.f32 %v383, %v425
      %v458 = vmul.f32 %v321, %v426
      %v459 = vmul.f32 %v386, %v427
      %v460 = vmul.f32 %v324, %v428
      %v461 = vmul.f32 %v389, %v429
      %v462 = vmul.f32 %v327, %v430
      %v463 = vmul.f32 %v392, %v431
      %v464 = vmul.f32 %v330, %v432
      %v465 = vmul.f32 %v395, %v433
      %v466 = vmul.f32 %v333, %v434
      %v467 = vmul.f32 %v398, %v435
      %v468 = vmul.f32 %v336, %v436
      %v469 = vmul.f32 %v401, %v437
      %v470 = vmul.f32 %v339, %v438
      %v471 = vmul.f32 %v404, %v439
      %v472 = vmul.f32 %v342, %v440
      %v473 = vmul.f32 %v407, %v441
      %v474 = vmul.f32 %v345, %v442
      %v475 = vmul.f32 %v410, %v443
      %v476 = vld [vmem:[%s3] sm:$0xff]
      %v477 = vld [vmem:[%s3 + $0x8] sm:$0xff]
      %v478 = vld [vmem:[%s3 + $0x10] sm:$0xff]
      %v479 = vld [vmem:[%s3 + $0x18] sm:$0xff]
      %v480 = vld [vmem:[%s3 + $0x20] sm:$0xff]
      %v481 = vld [vmem:[%s3 + $0x28] sm:$0xff]
      %v482 = vld [vmem:[%s3 + $0x30] sm:$0xff]
      %v483 = vld [vmem:[%s3 + $0x38] sm:$0xff]
      %v484 = vld [vmem:[%s3 + $0x40] sm:$0xff]
      %v485 = vld [vmem:[%s3 + $0x48] sm:$0xff]
      %v486 = vld [vmem:[%s3 + $0x50] sm:$0xff]
      %v487 = vld [vmem:[%s3 + $0x58] sm:$0xff]
      %v488 = vld [vmem:[%s3 + $0x60] sm:$0xff]
      %v489 = vld [vmem:[%s3 + $0x68] sm:$0xff]
      %v490 = vld [vmem:[%s3 + $0x70] sm:$0xff]
      %v491 = vld [vmem:[%s3 + $0x78] sm:$0xff]
      %v492 = vld [vmem:[%s3 + $0x80] sm:$0xff]
      %v493 = vld [vmem:[%s3 + $0x88] sm:$0xff]
      %v494 = vld [vmem:[%s3 + $0x90] sm:$0xff]
      %v495 = vld [vmem:[%s3 + $0x98] sm:$0xff]
      %v496 = vld [vmem:[%s3 + $0xa0] sm:$0xff]
      %v497 = vld [vmem:[%s3 + $0xa8] sm:$0xff]
      %v498 = vld [vmem:[%s3 + $0xb0] sm:$0xff]
      %v499 = vld [vmem:[%s3 + $0xb8] sm:$0xff]
      %v500 = vld [vmem:[%s3 + $0xc0] sm:$0xff]
      %v501 = vld [vmem:[%s3 + $0xc8] sm:$0xff]
      %v502 = vld [vmem:[%s3 + $0xd0] sm:$0xff]
      %v503 = vld [vmem:[%s3 + $0xd8] sm:$0xff]
      %v504 = vld [vmem:[%s3 + $0xe0] sm:$0xff]
      %v505 = vld [vmem:[%s3 + $0xe8] sm:$0xff]
      %v506 = vld [vmem:[%s3 + $0xf0] sm:$0xff]
      %v507 = vld [vmem:[%s3 + $0xf8] sm:$0xff]
      %508 = vmatpush.msra.mxu0 %v491
      %509 = vmatpush.msra.mxu0 %v490
      %510 = vmatpush.msra.mxu0 %v489
      %511 = vmatpush.msra.mxu0 %v488
      %512 = vmatpush.msra.mxu0 %v487
      %513 = vmatpush.msra.mxu0 %v486
      %514 = vmatpush.msra.mxu0 %v485
      %515 = vmatpush.msra.mxu0 %v484
      %516 = vmatpush.msra.mxu0 %v483
      %517 = vmatpush.msra.mxu0 %v482
      %518 = vmatpush.msra.mxu0 %v481
      %519 = vmatpush.msra.mxu0 %v480
      %520 = vmatpush.msra.mxu0 %v479
      %521 = vmatpush.msra.mxu0 %v478
      %522 = vmatpush.msra.mxu0 %v477
      %523 = vmatpush.msra.mxu0 %v476
      %524 = vmatmul.f32.gmra.mxu0 %v444
      %v525 = vpop.f32.mrf.mxu0
      %v526 = vadd.f32 0.0, %v525
      %527 = vmatmul.f32.gmra.mxu0 %v446
      %v528 = vpop.f32.mrf.mxu0
      %v529 = vadd.f32 0.0, %v528
      %530 = vmatmul.f32.gmra.mxu0 %v448
      %v531 = vpop.f32.mrf.mxu0
      %v532 = vadd.f32 0.0, %v531
      %533 = vmatmul.f32.gmra.mxu0 %v450
      %v534 = vpop.f32.mrf.mxu0
      %v535 = vadd.f32 0.0, %v534
      %536 = vmatmul.f32.gmra.mxu0 %v452
      %v537 = vpop.f32.mrf.mxu0
      %v538 = vadd.f32 0.0, %v537
      %539 = vmatmul.f32.gmra.mxu0 %v454
      %v540 = vpop.f32.mrf.mxu0
      %v541 = vadd.f32 0.0, %v540
      %542 = vmatmul.f32.gmra.mxu0 %v456
      %v543 = vpop.f32.mrf.mxu0
      %v544 = vadd.f32 0.0, %v543
      %545 = vmatmul.f32.gmra.mxu0 %v458
      %v546 = vpop.f32.mrf.mxu0
      %v547 = vadd.f32 0.0, %v546
      %548 = vmatmul.f32.gmra.mxu0 %v460
      %v549 = vpop.f32.mrf.mxu0
      %v550 = vadd.f32 0.0, %v549
      %551 = vmatmul.f32.gmra.mxu0 %v462
      %v552 = vpop.f32.mrf.mxu0
      %v553 = vadd.f32 0.0, %v552
      %554 = vmatmul.f32.gmra.mxu0 %v464
      %v555 = vpop.f32.mrf.mxu0
      %v556 = vadd.f32 0.0, %v555
      %557 = vmatmul.f32.gmra.mxu0 %v466
      %v558 = vpop.f32.mrf.mxu0
      %v559 = vadd.f32 0.0, %v558
      %560 = vmatmul.f32.gmra.mxu0 %v468
      %v561 = vpop.f32.mrf.mxu0
      %v562 = vadd.f32 0.0, %v561
      %563 = vmatmul.f32.gmra.mxu0 %v470
      %v564 = vpop.f32.mrf.mxu0
      %v565 = vadd.f32 0.0, %v564
      %566 = vmatmul.f32.gmra.mxu0 %v472
      %v567 = vpop.f32.mrf.mxu0
      %v568 = vadd.f32 0.0, %v567
      %569 = vmatmul.f32.gmra.mxu0 %v474
      %v570 = vpop.f32.mrf.mxu0
      %v571 = vadd.f32 0.0, %v570
      %572 = vdwg.mxu0
      %573 = vmatpush.msra.mxu0 %v507
      %574 = vmatpush.msra.mxu0 %v506
      %575 = vmatpush.msra.mxu0 %v505
      %576 = vmatpush.msra.mxu0 %v504
      %577 = vmatpush.msra.mxu0 %v503
      %578 = vmatpush.msra.mxu0 %v502
      %579 = vmatpush.msra.mxu0 %v501
      %580 = vmatpush.msra.mxu0 %v500
      %581 = vmatpush.msra.mxu0 %v499
      %582 = vmatpush.msra.mxu0 %v498
      %583 = vmatpush.msra.mxu0 %v497
      %584 = vmatpush.msra.mxu0 %v496
      %585 = vmatpush.msra.mxu0 %v495
      %586 = vmatpush.msra.mxu0 %v494
      %587 = vmatpush.msra.mxu0 %v493
      %588 = vmatpush.msra.mxu0 %v492
      %589 = vmatmul.f32.gmra.mxu0 %v445
      %v590 = vpop.f32.mrf.mxu0
      %v591 = vadd.f32 %v526, %v590
      %592 = vmatmul.f32.gmra.mxu0 %v447
      %v593 = vpop.f32.mrf.mxu0
      %v594 = vadd.f32 %v529, %v593
      %595 = vmatmul.f32.gmra.mxu0 %v449
      %v596 = vpop.f32.mrf.mxu0
      %v597 = vadd.f32 %v532, %v596
      %598 = vmatmul.f32.gmra.mxu0 %v451
      %v599 = vpop.f32.mrf.mxu0
      %v600 = vadd.f32 %v535, %v599
      %601 = vmatmul.f32.gmra.mxu0 %v453
      %v602 = vpop.f32.mrf.mxu0
      %v603 = vadd.f32 %v538, %v602
      %604 = vmatmul.f32.gmra.mxu0 %v455
      %v605 = vpop.f32.mrf.mxu0
      %v606 = vadd.f32 %v541, %v605
      %607 = vmatmul.f32.gmra.mxu0 %v457
      %v608 = vpop.f32.mrf.mxu0
      %v609 = vadd.f32 %v544, %v608
      %610 = vmatmul.f32.gmra.mxu0 %v459
      %v611 = vpop.f32.mrf.mxu0
      %v612 = vadd.f32 %v547, %v611
      %613 = vmatmul.f32.gmra.mxu0 %v461
      %v614 = vpop.f32.mrf.mxu0
      %v615 = vadd.f32 %v550, %v614
      %616 = vmatmul.f32.gmra.mxu0 %v463
      %v617 = vpop.f32.mrf.mxu0
      %v618 = vadd.f32 %v553, %v617
      %619 = vmatmul.f32.gmra.mxu0 %v465
      %v620 = vpop.f32.mrf.mxu0
      %v621 = vadd.f32 %v556, %v620
      %622 = vmatmul.f32.gmra.mxu0 %v467
      %v623 = vpop.f32.mrf.mxu0
      %v624 = vadd.f32 %v559, %v623
      %625 = vmatmul.f32.gmra.mxu0 %v469
      %v626 = vpop.f32.mrf.mxu0
      %v627 = vadd.f32 %v562, %v626
      %628 = vmatmul.f32.gmra.mxu0 %v471
      %v629 = vpop.f32.mrf.mxu0
      %v630 = vadd.f32 %v565, %v629
      %631 = vmatmul.f32.gmra.mxu0 %v473
      %v632 = vpop.f32.mrf.mxu0
      %v633 = vadd.f32 %v568, %v632
      %634 = vmatmul.f32.gmra.mxu0 %v475
      %v635 = vpop.f32.mrf.mxu0
      %v636 = vadd.f32 %v571, %v635
      %637 = vdwg.mxu0
      %638 = vst [vmem:[%s199] sm:$0xff] %v591
      %639 = vst [vmem:[%s199 + $0x8] sm:$0xff] %v594
      %640 = vst [vmem:[%s199 + $0x10] sm:$0xff] %v597
      %641 = vst [vmem:[%s199 + $0x18] sm:$0xff] %v600
      %642 = vst [vmem:[%s199 + $0x20] sm:$0xff] %v603
      %643 = vst [vmem:[%s199 + $0x28] sm:$0xff] %v606
      %644 = vst [vmem:[%s199 + $0x30] sm:$0xff] %v609
      %645 = vst [vmem:[%s199 + $0x38] sm:$0xff] %v612
      %646 = vst [vmem:[%s199 + $0x40] sm:$0xff] %v615
      %647 = vst [vmem:[%s199 + $0x48] sm:$0xff] %v618
      %648 = vst [vmem:[%s199 + $0x50] sm:$0xff] %v621
      %649 = vst [vmem:[%s199 + $0x58] sm:$0xff] %v624
      %650 = vst [vmem:[%s199 + $0x60] sm:$0xff] %v627
      %651 = vst [vmem:[%s199 + $0x68] sm:$0xff] %v630
      %652 = vst [vmem:[%s199 + $0x70] sm:$0xff] %v633
      %653 = vst [vmem:[%s199 + $0x78] sm:$0xff] %v636
      %s654 = smul.u32 16, %s15
      %p655 = scmp.lt.s32.totalorder %s654, 31
      %s656 = scalar_select %p655, %s654, 31
      %s657 = smul.addr %s656, 8
      %s658 = scalar_lea.vmem %s4, %s657
      // Predicated region
      $region37: #{rel_pos_emb.1} parent=35 // pred_check
        %p659 = pneg %p122
      $region38: #{rel_pos_emb.1} parent=35 // pred_check_branch
        %661 = sbr.rel (%p659) target = $region40
      $region39: #{rel_pos_emb.1} parent=35 // pred_region
        %s662 = smul.u32 16, %s15
      $region40: #{rel_pos_emb.1} parent=35 // pred_fallthru
        _
    $region36: #{rel_pos_emb.1} parent=5 // pred_fallthru
      _
    %p663 = scmp.le.s32.totalorder 2, %s10
    // Predicated region
    $region41: #{rel_pos_emb.1} parent=5 // pred_check
      %p664 = pneg %p663
    $region42: #{rel_pos_emb.1} parent=5 // pred_check_branch
      %666 = sbr.rel (%p664) target = $region44
    $region43: #{rel_pos_emb.1} parent=5 // pred_region
      %s667 = ssub.s32 %s10, 2
      // Predicated region
      $region45: #{rel_pos_emb.1} parent=43 // pred_check
        %p668 = pneg %p128
      $region46: #{rel_pos_emb.1} parent=43 // pred_check_branch
        %670 = sbr.rel (%p668) target = $region48
      $region47: #{rel_pos_emb.1} parent=43 // pred_region
        %s671 = smul.u32 16, %s16
        %p672 = scmp.lt.s32.totalorder %s671, 31
        %s673 = scalar_select %p672, %s671, 31
        %s674 = smul.addr %s673, 8
        %s675 = scalar_lea.vmem %s4, %s674
      $region48: #{rel_pos_emb.1} parent=43 // pred_fallthru
        _
    $region44: #{rel_pos_emb.1} parent=5 // pred_fallthru
      _
  $region6: #{rel_pos_emb.1} parent=0 // loop_footer
    %s14 = sadd.s32 1, %s10
  $region7: #{rel_pos_emb.1} parent=0 // loop_footer_branch
    %9 = sbr.rel target = $region3
  $region8: #{rel_pos_emb.1} parent=0 // loop_exit
    _

</llo_original>
